<compile_context>
chip_gen: v6e
topology: v6e:2x2x1
jax: 0.10.0
libtpu: 0.0.40
codegen_flags: <defaults>
</compile_context>

<pallas_src>
import functools

import jax
import jax.numpy as jnp
from jax.experimental import pallas as pl
from jax.experimental.pallas import tpu as pltpu


def _round_up(x, m):
    return (x + m - 1) // m * m


def _fused_mlp_kernel(*refs, n_hidden, negative_slope, apply_sigmoid):
    """Whole-MLP forward on one (TILE_B, Din) batch tile.

    refs layout:
      x, (w_0, b_0), ..., (w_{n-1}, b_{n-1}), w_head, b_head, out_ref, inter_ref
    Weights are (Din_l, Dout_l); biases are (1, Dout_l). The head weight/bias are
    zero-padded to a multiple of 128 output columns by the wrapper, so the head
    is a plain MXU matmul and the output store is a lane-dense unmasked vst.
    """
    x_ref = refs[0]
    out_ref, inter_ref = refs[-2], refs[-1]
    p_refs = refs[1:-2]

    h = x_ref[...]
    for l in range(n_hidden):
        w = p_refs[2 * l][...]
        b = p_refs[2 * l + 1][...]
        # MXU consumes operands in the stored param dtype (f32 or bf16);
        # accumulation, bias-add and activation stay in f32.
        y = jnp.dot(h.astype(w.dtype), w, preferred_element_type=jnp.float32)
        y = y + b.astype(jnp.float32)
        # LeakyReLU (slope in (0,1)) as max(y, slope*y): mul+max instead of
        # cmp+select+mul on the VPU.
        h = jnp.maximum(y, negative_slope * y)

    inter_ref[...] = h.astype(inter_ref.dtype)

    # Lane-dense head matmul (padded to >=128 columns in the wrapper).
    w_out = p_refs[2 * n_hidden][...]
    b_out = p_refs[2 * n_hidden + 1][...]
    logits = jnp.dot(h.astype(w_out.dtype), w_out,
                     preferred_element_type=jnp.float32)
    logits = logits + b_out.astype(jnp.float32)
    if apply_sigmoid:
        logits = jax.nn.sigmoid(logits)
    out_ref[...] = logits.astype(out_ref.dtype)


def discriminator_forward(params, input_tensor, *, sigmoid=True,
                          negative_slope=0.2, tile_b=512,
                          compute_dtype=None, intermediate_dtype=None,
                          vmem_budget_bytes=40 * 1024 * 1024):
    """Pallas equivalent of Discriminator.forward. Returns (output, intermediate).

    compute_dtype:       optional (e.g. jnp.bfloat16) — params are stored and fed
                         to the MXU in this dtype (recommended on v6e/v7x).
    intermediate_dtype:  optional dtype for the returned `intermediate` (e.g.
                         bf16 to halve the dominant HBM writeback).
    """
    B = input_tensor.shape[0]
    x = input_tensor.reshape(B, -1)                       # flatten(1, -1)
    Din = x.shape[1]
    in_dtype = x.dtype
    out_dtype = in_dtype
    inter_dtype = (jnp.dtype(intermediate_dtype)
                   if intermediate_dtype is not None else jnp.dtype(in_dtype))

    blocks = params["blocks"]
    w_out, b_out = params["out_fc"]
    out_size = w_out.shape[-1]
    d_last = blocks[-1][0].shape[1] if blocks else Din

    # Optional bf16 (or other) MXU feed: store params in compute_dtype so the
    # resident-weight VMEM footprint is halved as well.
    if compute_dtype is not None:
        cd = jnp.dtype(compute_dtype)
        blocks = [(w.astype(cd), b.astype(cd)) for (w, b) in blocks]
        w_out = w_out.astype(cd)
        b_out = b_out.astype(cd)

    # Lane-dense head: zero-pad the head weight/bias to >=128 output columns.
    # The MXU is idle at that point so the padded matmul is effectively free,
    # and the output store becomes an unmasked 128-lane vst instead of a
    # masked 1-wide vst.msk. The wrapper slices the real columns below.
    OUTP = _round_up(max(out_size, 1), 128)
    w_head = jnp.pad(w_out.reshape(d_last, out_size),
                     ((0, 0), (0, OUTP - out_size)))
    b_head = jnp.pad(b_out.reshape(1, out_size),
                     ((0, 0), (0, OUTP - out_size)))

    # --- Batch-tile selection -------------------------------------------------
    itemsize = jnp.dtype(in_dtype).itemsize
    sub = max(8, 32 // itemsize)            # sublane granule: 8/16/32 for 4/2/1-byte
    TILE_B = _round_up(min(tile_b, max(B, 1)), sub)
    if B > sub:
        # Keep >=2 grid steps so v7x's two TensorCores both get work.
        TILE_B = min(TILE_B, _round_up(pl.cdiv(B, 2), sub))
    TILE_B = max(TILE_B, sub)

    # Shrink TILE_B until the (double-buffered) VMEM footprint fits the budget
    # (40 MiB default leaves headroom on v7x's 64 MiB physical VMEM).
    param_bytes = sum(w.nbytes + b.nbytes for (w, b) in blocks)
    param_bytes += w_head.nbytes + b_head.nbytes
    inter_item = jnp.dtype(inter_dtype).itemsize
    out_item = jnp.dtype(out_dtype).itemsize

    def vmem_need(tile):
        act = 2 * tile * (Din * itemsize + d_last * inter_item + OUTP * out_item)
        return act + 2 * param_bytes        # resident params are double-buffered

    while TILE_B > sub and vmem_need(TILE_B) > vmem_budget_bytes:
        TILE_B = max(sub, _round_up(TILE_B // 2, sub))

    # Ragged last tile instead of a wrapper-side jnp.pad (avoids an extra full
    # HBM copy of x). NOTE: the final partial tile computes on unspecified rows
    # that are masked on store — safe only while every op stays row-independent.
    grid = (pl.cdiv(B, TILE_B),)

    flat_params = []
    in_specs = [pl.BlockSpec((TILE_B, Din), lambda i: (i, 0))]
    # Resident params (constant index_map). On v7x, single-buffering these
    # (pipeline_mode=pl.Buffered(1)) would halve their VMEM; omitted here to
    # stay portable — the vmem_need() estimate assumes the default 2 buffers.
    for (w, b) in blocks:
        flat_params += [w, b]
        in_specs += [pl.BlockSpec(w.shape, lambda i: (0, 0)),
                     pl.BlockSpec(b.shape, lambda i: (0, 0))]
    flat_params += [w_head, b_head]
    in_specs += [pl.BlockSpec(w_head.shape, lambda i: (0, 0)),
                 pl.BlockSpec(b_head.shape, lambda i: (0, 0))]

    kernel = functools.partial(
        _fused_mlp_kernel,
        n_hidden=len(blocks),
        negative_slope=negative_slope,
        apply_sigmoid=sigmoid,
    )

    # Advisory cost estimate so XLA can overlap neighbouring ops with this call.
    dims = [Din] + [w.shape[1] for (w, _) in blocks]
    flops = 2 * B * sum(dims[i] * dims[i + 1] for i in range(len(dims) - 1))
    flops += 2 * B * d_last * OUTP
    bytes_accessed = (x.nbytes + param_bytes
                      + B * OUTP * out_item + B * d_last * inter_item)
    transcendentals = B * OUTP if sigmoid else 0

    vmem_limit = int(min(max(vmem_need(TILE_B) * 1.25, 16 * 1024 * 1024),
                         64 * 1024 * 1024))

    out, inter = pl.pallas_call(
        kernel,
        out_shape=(jax.ShapeDtypeStruct((B, OUTP), out_dtype),
                   jax.ShapeDtypeStruct((B, d_last), inter_dtype)),
        grid=grid,
        in_specs=in_specs,
        out_specs=(pl.BlockSpec((TILE_B, OUTP), lambda i: (i, 0)),
                   pl.BlockSpec((TILE_B, d_last), lambda i: (i, 0))),
        compiler_params=pltpu.CompilerParams(
            dimension_semantics=("parallel",),   # batch tiles shard across TCs
            vmem_limit_bytes=vmem_limit,
        ),
        cost_estimate=pl.CostEstimate(flops=int(flops),
                                      transcendentals=int(transcendentals),
                                      bytes_accessed=int(bytes_accessed)),
    )(x, *flat_params)

    return out[:, :out_size], inter


def init_discriminator_params(key, hidden_channels, out_size=1, dtype=jnp.float32):
    """Deterministic parameter init matching the module's layer shapes.

    Weights are stored as (in_features, out_features) so the kernel computes
    y = x @ W + b with no transpose (equivalent to PyTorch's x @ W_pt.T).
    """
    params = {"blocks": [], "out_fc": None}
    n_blocks = len(hidden_channels) - 1
    keys = jax.random.split(key, n_blocks + 1)
    for i in range(n_blocks):
        din, dout = hidden_channels[i], hidden_channels[i + 1]
        kw, kb = jax.random.split(keys[i])
        scale = 1.0 / jnp.sqrt(jnp.asarray(din, dtype=jnp.float32))
        w = (jax.random.normal(kw, (din, dout), dtype=jnp.float32) * scale).astype(dtype)
        bvec = (jax.random.normal(kb, (1, dout), dtype=jnp.float32) * scale).astype(dtype)
        params["blocks"].append((w, bvec))
    din = hidden_channels[-1]
    kw, kb = jax.random.split(keys[-1])
    scale = 1.0 / jnp.sqrt(jnp.asarray(din, dtype=jnp.float32))
    w = (jax.random.normal(kw, (din, out_size), dtype=jnp.float32) * scale).astype(dtype)
    bvec = (jax.random.normal(kb, (1, out_size), dtype=jnp.float32) * scale).astype(dtype)
    params["out_fc"] = (w, bvec)
    return params


def _reference_forward(params, input_tensor, *, sigmoid=True, negative_slope=0.2):
    """Pure-JAX reference for correctness checking."""
    B = input_tensor.shape[0]
    h = input_tensor.reshape(B, -1)
    for (w, b) in params["blocks"]:
        h = jnp.dot(h, w, precision=jax.lax.Precision.HIGHEST) + b
        h = jnp.where(h >= 0, h, negative_slope * h)
    w_out, b_out = params["out_fc"]
    out = jnp.dot(h, w_out, precision=jax.lax.Precision.HIGHEST) + b_out
    if sigmoid:
        out = jax.nn.sigmoid(out)
    return out, h


if __name__ == "__main__":
    key = jax.random.PRNGKey(0)
    k_in, k_param = jax.random.split(key)

    # Small NCHW-style input: (B=10, C=4, H=8, W=8) -> flattened feature dim 256.
    # B=10 with tile_b=8 exercises multi-step batch tiling AND the ragged
    # (masked) final tile with no wrapper-side padding.
    B, C, H, W = 10, 4, 8, 8
    hidden_channels = [C * H * W, 256, 128]   # 256 -> 256 -> 128 (lane-dense)
    out_size = 1

    x = jax.random.normal(k_in, (B, C, H, W), dtype=jnp.float32)
    params = init_discriminator_params(k_param, hidden_channels, out_size)

    ref_out, ref_inter = _reference_forward(params, x, sigmoid=True)

    # f32 path: kernel uses MXU default precision vs HIGHEST in the reference.
    output, intermediate = discriminator_forward(params, x, sigmoid=True, tile_b=8)
    output = jax.block_until_ready(output)
    intermediate = jax.block_until_ready(intermediate)

    assert output.shape == (B, out_size)
    assert intermediate.shape == (B, hidden_channels[-1])
    assert jnp.allclose(output, ref_out, atol=5e-4, rtol=5e-4)
    assert jnp.allclose(intermediate, ref_inter, atol=5e-4, rtol=5e-4)

    # bf16 MXU feed (v6e/v7x recommendation): looser tolerance check.
    out_bf16, inter_bf16 = discriminator_forward(
        params, x, sigmoid=True, tile_b=8, compute_dtype=jnp.bfloat16)
    out_bf16 = jax.block_until_ready(out_bf16)
    inter_bf16 = jax.block_until_ready(inter_bf16)
    assert out_bf16.shape == (B, out_size)
    assert jnp.allclose(out_bf16.astype(jnp.float32), ref_out, atol=5e-2)
    assert bool(jnp.all(jnp.isfinite(inter_bf16)))

    print("KERNEL_OK")
</pallas_src>

<mosaic_0001>
module attributes {stable_mosaic.version = 11 : i64} {
  func.func @_fused_mlp_kernel(%arg0: i32, %arg1: memref<8x256xf32, #tpu.memory_space<vmem>>, %arg2: memref<256x256xf32, #tpu.memory_space<vmem>>, %arg3: memref<1x256xf32, #tpu.memory_space<vmem>>, %arg4: memref<256x128xf32, #tpu.memory_space<vmem>>, %arg5: memref<1x128xf32, #tpu.memory_space<vmem>>, %arg6: memref<128x128xf32, #tpu.memory_space<vmem>>, %arg7: memref<1x128xf32, #tpu.memory_space<vmem>>, %arg8: memref<8x128xf32, #tpu.memory_space<vmem>>, %arg9: memref<8x128xf32, #tpu.memory_space<vmem>>) attributes {dimension_semantics = [#tpu.dimension_semantics<parallel>], iteration_bounds = array<i64: 2>, scalar_prefetch = 0 : i64, scratch_operands = 0 : i64, tpu.core_type = #tpu.core_type<tc>, window_params = [{transform_indices = @transform_0, window_bounds = array<i64: 8, 256>}, {pipeline_mode = #tpu.pipeline_mode<synchronous>, transform_indices = @transform_1, window_bounds = array<i64: 256, 256>}, {pipeline_mode = #tpu.pipeline_mode<synchronous>, transform_indices = @transform_2, window_bounds = array<i64: 1, 256>}, {pipeline_mode = #tpu.pipeline_mode<synchronous>, transform_indices = @transform_3, window_bounds = array<i64: 256, 128>}, {pipeline_mode = #tpu.pipeline_mode<synchronous>, transform_indices = @transform_4, window_bounds = array<i64: 1, 128>}, {pipeline_mode = #tpu.pipeline_mode<synchronous>, transform_indices = @transform_5, window_bounds = array<i64: 128, 128>}, {pipeline_mode = #tpu.pipeline_mode<synchronous>, transform_indices = @transform_6, window_bounds = array<i64: 1, 128>}, {transform_indices = @transform_7, window_bounds = array<i64: 8, 128>}, {transform_indices = @transform_8, window_bounds = array<i64: 8, 128>}]} {
    %c0 = arith.constant 0 : index
    %c0_0 = arith.constant 0 : index
    %0 = vector.load %arg1[%c0, %c0_0] : memref<8x256xf32, #tpu.memory_space<vmem>>, vector<8x256xf32>
    %c0_1 = arith.constant 0 : index
    %c0_2 = arith.constant 0 : index
    %1 = vector.load %arg2[%c0_1, %c0_2] : memref<256x256xf32, #tpu.memory_space<vmem>>, vector<256x256xf32>
    %c0_3 = arith.constant 0 : index
    %c0_4 = arith.constant 0 : index
    %2 = vector.load %arg3[%c0_3, %c0_4] : memref<1x256xf32, #tpu.memory_space<vmem>>, vector<1x256xf32>
    %cst = arith.constant dense<0.000000e+00> : vector<8x256xf32>
    %3 = tpu.matmul %0, %1, %cst {dimension_numbers = #tpu.dot_dimension_numbers<[1], [0], [0], [1], [0, 0, 1, 1], [], []>} : vector<8x256xf32>, vector<256x256xf32>, vector<8x256xf32> -> vector<8x256xf32>
    %4 = vector.broadcast %2 : vector<1x256xf32> to vector<8x256xf32>
    %5 = arith.addf %3, %4 : vector<8x256xf32>
    %cst_5 = arith.constant 2.000000e-01 : f32
    %6 = vector.broadcast %cst_5 : f32 to vector<8x256xf32>
    %7 = arith.mulf %6, %5 : vector<8x256xf32>
    %8 = arith.maximumf %5, %7 : vector<8x256xf32>
    %c0_6 = arith.constant 0 : index
    %c0_7 = arith.constant 0 : index
    %9 = vector.load %arg4[%c0_6, %c0_7] : memref<256x128xf32, #tpu.memory_space<vmem>>, vector<256x128xf32>
    %c0_8 = arith.constant 0 : index
    %c0_9 = arith.constant 0 : index
    %10 = vector.load %arg5[%c0_8, %c0_9] : memref<1x128xf32, #tpu.memory_space<vmem>>, vector<1x128xf32>
    %cst_10 = arith.constant dense<0.000000e+00> : vector<8x128xf32>
    %11 = tpu.matmul %8, %9, %cst_10 {dimension_numbers = #tpu.dot_dimension_numbers<[1], [0], [0], [1], [0, 0, 1, 1], [], []>} : vector<8x256xf32>, vector<256x128xf32>, vector<8x128xf32> -> vector<8x128xf32>
    %12 = vector.broadcast %10 : vector<1x128xf32> to vector<8x128xf32>
    %13 = arith.addf %11, %12 : vector<8x128xf32>
    %cst_11 = arith.constant 2.000000e-01 : f32
    %14 = vector.broadcast %cst_11 : f32 to vector<8x128xf32>
    %15 = arith.mulf %14, %13 : vector<8x128xf32>
    %16 = arith.maximumf %13, %15 : vector<8x128xf32>
    %c0_12 = arith.constant 0 : index
    %c0_13 = arith.constant 0 : index
    %17 = vector.load %arg9[%c0_12, %c0_13] : memref<8x128xf32, #tpu.memory_space<vmem>>, vector<8x128xf32>
    tpu.vector_store %arg9[%c0_12, %c0_13], %16 {strides = array<i32>} : memref<8x128xf32, #tpu.memory_space<vmem>>, vector<8x128xf32>,
    %c0_14 = arith.constant 0 : index
    %c0_15 = arith.constant 0 : index
    %18 = vector.load %arg6[%c0_14, %c0_15] : memref<128x128xf32, #tpu.memory_space<vmem>>, vector<128x128xf32>
    %c0_16 = arith.constant 0 : index
    %c0_17 = arith.constant 0 : index
    %19 = vector.load %arg7[%c0_16, %c0_17] : memref<1x128xf32, #tpu.memory_space<vmem>>, vector<1x128xf32>
    %cst_18 = arith.constant dense<0.000000e+00> : vector<8x128xf32>
    %20 = tpu.matmul %16, %18, %cst_18 {dimension_numbers = #tpu.dot_dimension_numbers<[1], [0], [0], [1], [0, 0, 1, 1], [], []>} : vector<8x128xf32>, vector<128x128xf32>, vector<8x128xf32> -> vector<8x128xf32>
    %21 = vector.broadcast %19 : vector<1x128xf32> to vector<8x128xf32>
    %22 = arith.addf %20, %21 : vector<8x128xf32>
    %23 = arith.negf %22 : vector<8x128xf32>
    %24 = math.exp %23 : vector<8x128xf32>
    %cst_19 = arith.constant 1.000000e+00 : f32
    %25 = vector.broadcast %cst_19 : f32 to vector<8x128xf32>
    %26 = arith.addf %25, %24 : vector<8x128xf32>
    %27 = arith.divf %25, %26 : vector<8x128xf32>
    %c0_20 = arith.constant 0 : index
    %c0_21 = arith.constant 0 : index
    %28 = vector.load %arg8[%c0_20, %c0_21] : memref<8x128xf32, #tpu.memory_space<vmem>>, vector<8x128xf32>
    tpu.vector_store %arg8[%c0_20, %c0_21], %27 {strides = array<i32>} : memref<8x128xf32, #tpu.memory_space<vmem>>, vector<8x128xf32>,
    return
  }
  func.func @transform_0(%arg0: i32) -> (i32, i32) {
    %c0_i32 = arith.constant 0 : i32
    %c0_i32_0 = arith.constant 0 : i32
    return %arg0, %c0_i32 : i32, i32
  }
  func.func @transform_1(%arg0: i32) -> (i32, i32) {
    %c0_i32 = arith.constant 0 : i32
    %c0_i32_0 = arith.constant 0 : i32
    %c0_i32_1 = arith.constant 0 : i32
    return %c0_i32, %c0_i32_0 : i32, i32
  }
  func.func @transform_2(%arg0: i32) -> (i32, i32) {
    %c0_i32 = arith.constant 0 : i32
    %c0_i32_0 = arith.constant 0 : i32
    %c0_i32_1 = arith.constant 0 : i32
    return %c0_i32, %c0_i32_0 : i32, i32
  }
  func.func @transform_3(%arg0: i32) -> (i32, i32) {
    %c0_i32 = arith.constant 0 : i32
    %c0_i32_0 = arith.constant 0 : i32
    %c0_i32_1 = arith.constant 0 : i32
    return %c0_i32, %c0_i32_0 : i32, i32
  }
  func.func @transform_4(%arg0: i32) -> (i32, i32) {
    %c0_i32 = arith.constant 0 : i32
    %c0_i32_0 = arith.constant 0 : i32
    %c0_i32_1 = arith.constant 0 : i32
    return %c0_i32, %c0_i32_0 : i32, i32
  }
  func.func @transform_5(%arg0: i32) -> (i32, i32) {
    %c0_i32 = arith.constant 0 : i32
    %c0_i32_0 = arith.constant 0 : i32
    %c0_i32_1 = arith.constant 0 : i32
    return %c0_i32, %c0_i32_0 : i32, i32
  }
  func.func @transform_6(%arg0: i32) -> (i32, i32) {
    %c0_i32 = arith.constant 0 : i32
    %c0_i32_0 = arith.constant 0 : i32
    %c0_i32_1 = arith.constant 0 : i32
    return %c0_i32, %c0_i32_0 : i32, i32
  }
  func.func @transform_7(%arg0: i32) -> (i32, i32) {
    %c0_i32 = arith.constant 0 : i32
    %c0_i32_0 = arith.constant 0 : i32
    return %arg0, %c0_i32 : i32, i32
  }
  func.func @transform_8(%arg0: i32) -> (i32, i32) {
    %c0_i32 = arith.constant 0 : i32
    %c0_i32_0 = arith.constant 0 : i32
    return %arg0, %c0_i32 : i32, i32
  }
}

</mosaic_0001>

<llo_original>
// kernel: tpu_custom_call.1
$region0: #{tpu_custom_call.1}
  #allocation0 [shape = 'u32[]', space=smem, size = 0x4, offset = 0x4, fixed_abs, tag = 'smem constant byte address 0x4 - core index']
  #allocation1 [shape = 'u32[144,128]{1,0:T(1,128)}', space=vmem, size = 0x12000, scoped, tag = 'internal scratch']
  %s0 = inlined_call_operand.hbm [shape: f32[10,256], index: 0, kind: input, shape index: {}]
  %s1 = inlined_call_operand.hbm [shape: f32[256,256], index: 1, kind: input, shape index: {}]
  %s2 = inlined_call_operand.vmem [shape: f32[1,256], index: 2, kind: input, shape index: {}]
  %s3 = inlined_call_operand.hbm [shape: f32[256,128], index: 3, kind: input, shape index: {}]
  %s4 = inlined_call_operand.vmem [shape: f32[1,128], index: 4, kind: input, shape index: {}]
  %s5 = inlined_call_operand.hbm [shape: f32[128,128], index: 5, kind: input, shape index: {}]
  %s6 = inlined_call_operand.vmem [shape: f32[1,128], index: 6, kind: input, shape index: {}]
  %s7 = inlined_call_operand.hbm [shape: f32[10,128], index: 7, kind: output, shape index: {0}]
  %s8 = inlined_call_operand.hbm [shape: f32[10,128], index: 8, kind: output, shape index: {1}]
  %9 = xla_tuple %s7, %s8
  %s10 = sld [smem:[#allocation0]]
  $region85: #{tpu_custom_call.1} parent=0
    _
  %s12 = ssub.s32 1, %s10
  %s13 = scalar_select 0, %s12, %s10
  $region1: #{tpu_custom_call.1} parent=0
    #allocation2 [shape = 'u8[16384]{0}', space=vmem, size = 0x4000, scoped, tag = 'input window, operand 0']
    #allocation3 [shape = 's32[2]{0}', space=sflag, size = 0x8, scoped, tag = 'scoped memory for tpu_custom_call.1']
    #allocation4 [shape = 's32[2]{0}', space=sflag, size = 0x8, scoped, tag = 'scoped memory for tpu_custom_call.1']
    #allocation5 [shape = 'u8[262144]{0}', space=vmem, size = 0x40000, scoped, tag = 'input window, operand 1, single buffered']
    #allocation6 [shape = 's32[1]{0}', space=sflag, size = 0x4, scoped, tag = 'scoped memory for tpu_custom_call.1']
    #allocation7 [shape = 'u8[131072]{0}', space=vmem, size = 0x20000, scoped, tag = 'input window, operand 3, single buffered']
    #allocation8 [shape = 'u8[65536]{0}', space=vmem, size = 0x10000, scoped, tag = 'input window, operand 5, single buffered']
    #allocation9 [shape = 's32[1]{0}', space=sflag, size = 0x4, scoped, tag = 'scoped memory for tpu_custom_call.1']
    #allocation10 [shape = 'u8[8192]{0}', space=vmem, size = 0x2000, scoped, tag = 'output window, operand 0']
    #allocation11 [shape = 'u8[8192]{0}', space=vmem, size = 0x2000, scoped, tag = 'output window, operand 1']
    #allocation12 [shape = 's32[2]{0}', space=sflag, size = 0x8, scoped, tag = 'scoped memory for tpu_custom_call.1']
    %14 = vsyncpa [#allocation3], 0
    %s15 = scalar_lea.sflag [#allocation3], 1
    %16 = vsyncpa %s15, 0
    %17 = vsyncpa [#allocation6], 0
    %18 = vsyncpa [#allocation9], 0
    %19 = vsyncpa [#allocation4], 0
    %s20 = scalar_lea.sflag [#allocation4], 1
    %21 = vsyncpa %s20, 0
    %22 = vsyncpa [#allocation12], 0
    %s23 = scalar_lea.sflag [#allocation12], 1
    %24 = vsyncpa %s23, 0
    loop: start=0, step=1, limit=4
    $region2: #{tpu_custom_call.1} parent=1 // loop_pre_header
      _
    $region3: #{tpu_custom_call.1} parent=1 // loop_header
      %s26 = sphi 0, %s30
      %p27 = scmp.ge.s32.totalorder %s26, 4
      %s36 = sphi 0, %s38
      %s39 = sphi 0, %s36
      %s40 = sphi 0, %s39
      %s56 = sphi 0, %s40
      %s60 = sphi 0, %s60
      %s62 = sphi 0, %s60
      %s63 = sphi 0, %s62
      %s77 = sphi 0, %s63
      %s81 = sphi 0, %s81
      %s83 = sphi 0, %s81
      %s84 = sphi 0, %s83
      %s98 = sphi 0, %s84
      %s102 = sphi 0, %s102
      %s104 = sphi 0, %s102
      %s105 = sphi 0, %s104
      %s119 = sphi 0, %s105
      %s123 = sphi 0, %s123
      %s125 = sphi 0, %s123
      %s126 = sphi 0, %s125
      %s140 = sphi 0, %s126
      %s144 = sphi 0, %s144
      %s146 = sphi 0, %s144
      %s147 = sphi 0, %s146
      %s161 = sphi 0, %s147
      %s165 = sphi 0, %s165
      %s167 = sphi 0, %s165
      %s168 = sphi 0, %s167
      %s182 = sphi 0, %s168
      %s188 = sphi 0, %s190
      %s191 = sphi 0, %s188
      %s192 = sphi 0, %s191
      %s208 = sphi 0, %s192
      %s214 = sphi 0, %s216
      %s217 = sphi 0, %s214
      %s218 = sphi 0, %s217
      %s234 = sphi 0, %s218
    $region4: #{tpu_custom_call.1} parent=1 // loop_header_branch
      %29 = sbr.rel (%p27) target = $region8
    $region5: #{tpu_custom_call.1} parent=1 // loop_body
      %s31 = ssub.s32 %s26, 1
      %s32 = ssub.s32 %s26, 2
      %s33 = sadd.s32 %s26, 1
      %s34 = ssub.s32 %s26, %s33
      %p35 = scmp.eq.s32.totalorder %s34, 0
      %s37 = sadd.s32 %s36, 1
      %s38 = scalar_select %p35, %s36, %s37
      %p41 = pneg %p35
      %p42 = scmp.eq.s32.totalorder %s26, 1
      %p43 = por %p41, %p42
      %p44 = scmp.ne.s32.totalorder %s36, %s39
      %p45 = scmp.eq.s32.totalorder %s26, 0
      %p46 = por %p44, %p45
      %p47 = scmp.ne.s32.totalorder %s36, %s39
      %p48 = scmp.eq.s32.totalorder %s31, 1
      %p49 = por %p47, %p48
      %p50 = scmp.ne.s32.totalorder %s39, %s40
      %p51 = scmp.eq.s32.totalorder %s31, 0
      %p52 = por %p50, %p51
      %p53 = scmp.ne.s32.totalorder %s39, %s40
      %p54 = scmp.eq.s32.totalorder %s32, 1
      %p55 = por %p53, %p54
      %p57 = scmp.ne.s32.totalorder %s40, %s56
      %p58 = scmp.eq.s32.totalorder %s32, 0
      %p59 = por %p57, %p58
      %s61 = sadd.s32 %s60, 1
      %p64 = scmp.eq.s32.totalorder %s26, 1
      %p65 = scmp.ne.s32.totalorder %s60, %s62
      %p66 = scmp.eq.s32.totalorder %s26, 0
      %p67 = por %p65, %p66
      %p68 = scmp.ne.s32.totalorder %s60, %s62
      %p69 = scmp.eq.s32.totalorder %s31, 1
      %p70 = por %p68, %p69
      %p71 = scmp.ne.s32.totalorder %s62, %s63
      %p72 = scmp.eq.s32.totalorder %s31, 0
      %p73 = por %p71, %p72
      %p74 = scmp.ne.s32.totalorder %s62, %s63
      %p75 = scmp.eq.s32.totalorder %s32, 1
      %p76 = por %p74, %p75
      %p78 = scmp.ne.s32.totalorder %s63, %s77
      %p79 = scmp.eq.s32.totalorder %s32, 0
      %p80 = por %p78, %p79
      %s82 = sadd.s32 %s81, 1
      %p85 = scmp.eq.s32.totalorder %s26, 1
      %p86 = scmp.ne.s32.totalorder %s81, %s83
      %p87 = scmp.eq.s32.totalorder %s26, 0
      %p88 = por %p86, %p87
      %p89 = scmp.ne.s32.totalorder %s81, %s83
      %p90 = scmp.eq.s32.totalorder %s31, 1
      %p91 = por %p89, %p90
      %p92 = scmp.ne.s32.totalorder %s83, %s84
      %p93 = scmp.eq.s32.totalorder %s31, 0
      %p94 = por %p92, %p93
      %p95 = scmp.ne.s32.totalorder %s83, %s84
      %p96 = scmp.eq.s32.totalorder %s32, 1
      %p97 = por %p95, %p96
      %p99 = scmp.ne.s32.totalorder %s84, %s98
      %p100 = scmp.eq.s32.totalorder %s32, 0
      %p101 = por %p99, %p100
      %s103 = sadd.s32 %s102, 1
      %p106 = scmp.eq.s32.totalorder %s26, 1
      %p107 = scmp.ne.s32.totalorder %s102, %s104
      %p108 = scmp.eq.s32.totalorder %s26, 0
      %p109 = por %p107, %p108
      %p110 = scmp.ne.s32.totalorder %s102, %s104
      %p111 = scmp.eq.s32.totalorder %s31, 1
      %p112 = por %p110, %p111
      %p113 = scmp.ne.s32.totalorder %s104, %s105
      %p114 = scmp.eq.s32.totalorder %s31, 0
      %p115 = por %p113, %p114
      %p116 = scmp.ne.s32.totalorder %s104, %s105
      %p117 = scmp.eq.s32.totalorder %s32, 1
      %p118 = por %p116, %p117
      %p120 = scmp.ne.s32.totalorder %s105, %s119
      %p121 = scmp.eq.s32.totalorder %s32, 0
      %p122 = por %p120, %p121
      %s124 = sadd.s32 %s123, 1
      %p127 = scmp.eq.s32.totalorder %s26, 1
      %p128 = scmp.ne.s32.totalorder %s123, %s125
      %p129 = scmp.eq.s32.totalorder %s26, 0
      %p130 = por %p128, %p129
      %p131 = scmp.ne.s32.totalorder %s123, %s125
      %p132 = scmp.eq.s32.totalorder %s31, 1
      %p133 = por %p131, %p132
      %p134 = scmp.ne.s32.totalorder %s125, %s126
      %p135 = scmp.eq.s32.totalorder %s31, 0
      %p136 = por %p134, %p135
      %p137 = scmp.ne.s32.totalorder %s125, %s126
      %p138 = scmp.eq.s32.totalorder %s32, 1
      %p139 = por %p137, %p138
      %p141 = scmp.ne.s32.totalorder %s126, %s140
      %p142 = scmp.eq.s32.totalorder %s32, 0
      %p143 = por %p141, %p142
      %s145 = sadd.s32 %s144, 1
      %p148 = scmp.eq.s32.totalorder %s26, 1
      %p149 = scmp.ne.s32.totalorder %s144, %s146
      %p150 = scmp.eq.s32.totalorder %s26, 0
      %p151 = por %p149, %p150
      %p152 = scmp.ne.s32.totalorder %s144, %s146
      %p153 = scmp.eq.s32.totalorder %s31, 1
      %p154 = por %p152, %p153
      %p155 = scmp.ne.s32.totalorder %s146, %s147
      %p156 = scmp.eq.s32.totalorder %s31, 0
      %p157 = por %p155, %p156
      %p158 = scmp.ne.s32.totalorder %s146, %s147
      %p159 = scmp.eq.s32.totalorder %s32, 1
      %p160 = por %p158, %p159
      %p162 = scmp.ne.s32.totalorder %s147, %s161
      %p163 = scmp.eq.s32.totalorder %s32, 0
      %p164 = por %p162, %p163
      %s166 = sadd.s32 %s165, 1
      %p169 = scmp.eq.s32.totalorder %s26, 1
      %p170 = scmp.ne.s32.totalorder %s165, %s167
      %p171 = scmp.eq.s32.totalorder %s26, 0
      %p172 = por %p170, %p171
      %p173 = scmp.ne.s32.totalorder %s165, %s167
      %p174 = scmp.eq.s32.totalorder %s31, 1
      %p175 = por %p173, %p174
      %p176 = scmp.ne.s32.totalorder %s167, %s168
      %p177 = scmp.eq.s32.totalorder %s31, 0
      %p178 = por %p176, %p177
      %p179 = scmp.ne.s32.totalorder %s167, %s168
      %p180 = scmp.eq.s32.totalorder %s32, 1
      %p181 = por %p179, %p180
      %p183 = scmp.ne.s32.totalorder %s168, %s182
      %p184 = scmp.eq.s32.totalorder %s32, 0
      %p185 = por %p183, %p184
      %s186 = ssub.s32 %s26, %s33
      %p187 = scmp.eq.s32.totalorder %s186, 0
      %s189 = sadd.s32 %s188, 1
      %s190 = scalar_select %p187, %s188, %s189
      %p193 = pneg %p187
      %p194 = scmp.eq.s32.totalorder %s26, 1
      %p195 = por %p193, %p194
      %p196 = scmp.ne.s32.totalorder %s188, %s191
      %p197 = scmp.eq.s32.totalorder %s26, 0
      %p198 = por %p196, %p197
      %p199 = scmp.ne.s32.totalorder %s188, %s191
      %p200 = scmp.eq.s32.totalorder %s31, 1
      %p201 = por %p199, %p200
      %p202 = scmp.ne.s32.totalorder %s191, %s192
      %p203 = scmp.eq.s32.totalorder %s31, 0
      %p204 = por %p202, %p203
      %p205 = scmp.ne.s32.totalorder %s191, %s192
      %p206 = scmp.eq.s32.totalorder %s32, 1
      %p207 = por %p205, %p206
      %p209 = scmp.ne.s32.totalorder %s192, %s208
      %p210 = scmp.eq.s32.totalorder %s32, 0
      %p211 = por %p209, %p210
      %s212 = ssub.s32 %s26, %s33
      %p213 = scmp.eq.s32.totalorder %s212, 0
      %s215 = sadd.s32 %s214, 1
      %s216 = scalar_select %p213, %s214, %s215
      %p219 = pneg %p213
      %p220 = scmp.eq.s32.totalorder %s26, 1
      %p221 = por %p219, %p220
      %p222 = scmp.ne.s32.totalorder %s214, %s217
      %p223 = scmp.eq.s32.totalorder %s26, 0
      %p224 = por %p222, %p223
      %p225 = scmp.ne.s32.totalorder %s214, %s217
      %p226 = scmp.eq.s32.totalorder %s31, 1
      %p227 = por %p225, %p226
      %p228 = scmp.ne.s32.totalorder %s217, %s218
      %p229 = scmp.eq.s32.totalorder %s31, 0
      %p230 = por %p228, %p229
      %p231 = scmp.ne.s32.totalorder %s217, %s218
      %p232 = scmp.eq.s32.totalorder %s32, 1
      %p233 = por %p231, %p232
      %p235 = scmp.ne.s32.totalorder %s218, %s234
      %p236 = scmp.eq.s32.totalorder %s32, 0
      %p237 = por %p235, %p236
      %p238 = scmp.le.s32.totalorder 1, %s26
      %p239 = scmp.lt.s32.totalorder %s26, 3
      %p240 = pnand %p238, %p239
      %p241 = pneg %p240
      // Predicated region
      $region9: #{tpu_custom_call.1} parent=5 // pred_check
        _
      $region10: #{tpu_custom_call.1} parent=5 // pred_check_branch
        %243 = sbr.rel (%p240) target = $region12
      $region11: #{tpu_custom_call.1} parent=5 // pred_region
        %s244 = ssub.s32 %s26, 1
        // Predicated region
        $region13: #{tpu_custom_call.1} parent=11 // pred_check
          %p245 = pneg %p73
        $region14: #{tpu_custom_call.1} parent=11 // pred_check_branch
          %247 = sbr.rel (%p245) target = $region16
        $region15: #{tpu_custom_call.1} parent=11 // pred_region
          %s249 = ssub.s32 8192, 8192
          %250 = vsyncadd [#allocation6], %s249
          %s251 = sshll.u32 [#allocation5], 4
          %s252 = int_to_ptr.vmem [resolvable:$true] %s251
          %257 = dma.hbm_to_vmem [thread:$0]  %s1, 8192, %s252, [#allocation6], 256, 256, 16
        $region16: #{tpu_custom_call.1} parent=11 // pred_fallthru
          _
        // Predicated region
        $region17: #{tpu_custom_call.1} parent=11 // pred_check
          %p258 = pneg %p94
        $region18: #{tpu_custom_call.1} parent=11 // pred_check_branch
          %260 = sbr.rel (%p258) target = $region20
        $region19: #{tpu_custom_call.1} parent=11 // pred_region
          _
        $region20: #{tpu_custom_call.1} parent=11 // pred_fallthru
          _
        // Predicated region
        $region21: #{tpu_custom_call.1} parent=11 // pred_check
          %p261 = pneg %p115
        $region22: #{tpu_custom_call.1} parent=11 // pred_check_branch
          %263 = sbr.rel (%p261) target = $region24
        $region23: #{tpu_custom_call.1} parent=11 // pred_region
          %s265 = ssub.s32 4096, 4096
          %266 = vsyncadd [#allocation6], %s265
          %s267 = sshll.u32 [#allocation7], 4
          %s268 = int_to_ptr.vmem [resolvable:$true] %s267
          %273 = dma.hbm_to_vmem [thread:$0]  %s3, 4096, %s268, [#allocation6], 128, 128, 8
        $region24: #{tpu_custom_call.1} parent=11 // pred_fallthru
          _
        // Predicated region
        $region25: #{tpu_custom_call.1} parent=11 // pred_check
          %p274 = pneg %p136
        $region26: #{tpu_custom_call.1} parent=11 // pred_check_branch
          %276 = sbr.rel (%p274) target = $region28
        $region27: #{tpu_custom_call.1} parent=11 // pred_region
          _
        $region28: #{tpu_custom_call.1} parent=11 // pred_fallthru
          _
        // Predicated region
        $region29: #{tpu_custom_call.1} parent=11 // pred_check
          %p277 = pneg %p157
        $region30: #{tpu_custom_call.1} parent=11 // pred_check_branch
          %279 = sbr.rel (%p277) target = $region32
        $region31: #{tpu_custom_call.1} parent=11 // pred_region
          %s281 = ssub.s32 2048, 2048
          %282 = vsyncadd [#allocation9], %s281
          %s283 = sshll.u32 [#allocation8], 4
          %s284 = int_to_ptr.vmem [resolvable:$true] %s283
          %289 = dma.hbm_to_vmem [thread:$0]  %s5, 2048, %s284, [#allocation9], 128, 128, 8
        $region32: #{tpu_custom_call.1} parent=11 // pred_fallthru
          _
        // Predicated region
        $region33: #{tpu_custom_call.1} parent=11 // pred_check
          %p290 = pneg %p178
        $region34: #{tpu_custom_call.1} parent=11 // pred_check_branch
          %292 = sbr.rel (%p290) target = $region36
        $region35: #{tpu_custom_call.1} parent=11 // pred_region
          _
        $region36: #{tpu_custom_call.1} parent=11 // pred_fallthru
          _
      $region12: #{tpu_custom_call.1} parent=5 // pred_fallthru
        _
      %p293 = scmp.lt.s32.totalorder %s26, 2
      // Predicated region
      $region37: #{tpu_custom_call.1} parent=5 // pred_check
        %p294 = pneg %p293
      $region38: #{tpu_custom_call.1} parent=5 // pred_check_branch
        %296 = sbr.rel (%p294) target = $region40
      $region39: #{tpu_custom_call.1} parent=5 // pred_region
        // Predicated region
        $region41: #{tpu_custom_call.1} parent=39 // pred_check
          %p297 = pneg %p46
        $region42: #{tpu_custom_call.1} parent=39 // pred_check_branch
          %299 = sbr.rel (%p297) target = $region44
        $region43: #{tpu_custom_call.1} parent=39 // pred_region
          %s300 = sand.u32 %s36, 1
          %s301 = scalar_lea.sflag [#allocation3], %s300
          %s302 = sand.u32 %s36, 1
          %s303 = smul.addr %s302, 16
          %s304 = scalar_lea.vmem [#allocation2], %s303
          %s306 = ssub.s32 256, 256
          %307 = vsyncadd %s301, %s306
          %s308 = smul.addr %s26, 2
          %s309 = smul.addr %s308, 128
          %s310 = scalar_lea.hbm %s0, %s309
          %s312 = sshll.u32 %s304, 4
          %s313 = int_to_ptr.vmem [resolvable:$true] %s312
          %315 = dma.hbm_to_vmem [thread:$0]  %s310, 256, %s313, %s301
        $region44: #{tpu_custom_call.1} parent=39 // pred_fallthru
          _
      $region40: #{tpu_custom_call.1} parent=5 // pred_fallthru
        _
      %p316 = scmp.le.s32.totalorder 1, %s26
      %p317 = scmp.lt.s32.totalorder %s26, 3
      %p318 = pnand %p316, %p317
      %p319 = pneg %p318
      // Predicated region
      $region45: #{tpu_custom_call.1} parent=5 // pred_check
        _
      $region46: #{tpu_custom_call.1} parent=5 // pred_check_branch
        %321 = sbr.rel (%p318) target = $region48
      $region47: #{tpu_custom_call.1} parent=5 // pred_region
        %s322 = ssub.s32 %s26, 1
        %s323 = sand.u32 %s39, 1
        %s324 = scalar_lea.sflag [#allocation3], %s323
        %s325 = sand.u32 %s39, 1
        %s326 = smul.addr %s325, 16
        %s327 = scalar_lea.vmem [#allocation2], %s326
        // Predicated region
        $region49: #{tpu_custom_call.1} parent=47 // pred_check
          %p328 = pneg %p52
        $region50: #{tpu_custom_call.1} parent=47 // pred_check_branch
          %330 = sbr.rel (%p328) target = $region52
        $region51: #{tpu_custom_call.1} parent=47 // pred_region
          %331 = dma.done %s324, 256
        $region52: #{tpu_custom_call.1} parent=47 // pred_fallthru
          _
        // Predicated region
        $region53: #{tpu_custom_call.1} parent=47 // pred_check
          %p332 = pneg %p73
        $region54: #{tpu_custom_call.1} parent=47 // pred_check_branch
          %334 = sbr.rel (%p332) target = $region56
        $region55: #{tpu_custom_call.1} parent=47 // pred_region
          %335 = dma.done [#allocation6], 8192
        $region56: #{tpu_custom_call.1} parent=47 // pred_fallthru
          _
        // Predicated region
        $region57: #{tpu_custom_call.1} parent=47 // pred_check
          %p336 = pneg %p115
        $region58: #{tpu_custom_call.1} parent=47 // pred_check_branch
          %338 = sbr.rel (%p336) target = $region60
        $region59: #{tpu_custom_call.1} parent=47 // pred_region
          %339 = dma.done [#allocation6], 4096
        $region60: #{tpu_custom_call.1} parent=47 // pred_fallthru
          _
        // Predicated region
        $region61: #{tpu_custom_call.1} parent=47 // pred_check
          %p340 = pneg %p157
        $region62: #{tpu_custom_call.1} parent=47 // pred_check_branch
          %342 = sbr.rel (%p340) target = $region64
        $region63: #{tpu_custom_call.1} parent=47 // pred_region
          %343 = dma.done [#allocation9], 2048
        $region64: #{tpu_custom_call.1} parent=47 // pred_fallthru
          _
        %s344 = sand.u32 %s39, 1
        %s345 = scalar_lea.sflag [#allocation3], %s344
        %s346 = sand.u32 %s39, 1
        %s347 = smul.addr %s346, 16
        %s348 = scalar_lea.vmem [#allocation2], %s347
        %p349 = pneg %p52
        %p350 = pneg %p49
        %p351 = pneg %p73
        %p352 = pneg %p70
        %p353 = pneg %p94
        %p354 = pneg %p91
        %p355 = pneg %p115
        %p356 = pneg %p112
        %p357 = pneg %p136
        %p358 = pneg %p133
        %p359 = pneg %p157
        %p360 = pneg %p154
        %p361 = pneg %p178
        %p362 = pneg %p175
        %p363 = pneg %p204
        %p364 = pneg %p201
        %s365 = sand.u32 %s191, 1
        %s366 = scalar_lea.sflag [#allocation4], %s365
        %s367 = sand.u32 %s191, 1
        %s368 = smul.addr %s367, 8
        %s369 = scalar_lea.vmem [#allocation10], %s368
        %p370 = pneg %p230
        %p371 = pneg %p227
        %s372 = sand.u32 %s217, 1
        %s373 = scalar_lea.sflag [#allocation12], %s372
        %s374 = sand.u32 %s217, 1
        %s375 = smul.addr %s374, 8
        %s376 = scalar_lea.vmem [#allocation11], %s375
        %v377 = vld [vmem:[%s327] sm:$0xff]
        %v378 = vld [vmem:[%s327 + $0x8] sm:$0xff]
        %v379 = vld [vmem:[#allocation5] sm:$0xff]
        %v380 = vld [vmem:[#allocation5 + $0x8] sm:$0xff]
        %v381 = vld [vmem:[#allocation5 + $0x10] sm:$0xff]
        %v382 = vld [vmem:[#allocation5 + $0x18] sm:$0xff]
        %v383 = vld [vmem:[#allocation5 + $0x20] sm:$0xff]
        %v384 = vld [vmem:[#allocation5 + $0x28] sm:$0xff]
        %v385 = vld [vmem:[#allocation5 + $0x30] sm:$0xff]
        %v386 = vld [vmem:[#allocation5 + $0x38] sm:$0xff]
        %v387 = vld [vmem:[#allocation5 + $0x40] sm:$0xff]
        %v388 = vld [vmem:[#allocation5 + $0x48] sm:$0xff]
        %v389 = vld [vmem:[#allocation5 + $0x50] sm:$0xff]
        %v390 = vld [vmem:[#allocation5 + $0x58] sm:$0xff]
        %v391 = vld [vmem:[#allocation5 + $0x60] sm:$0xff]
        %v392 = vld [vmem:[#allocation5 + $0x68] sm:$0xff]
        %v393 = vld [vmem:[#allocation5 + $0x70] sm:$0xff]
        %v394 = vld [vmem:[#allocation5 + $0x78] sm:$0xff]
        %v395 = vld [vmem:[#allocation5 + $0x80] sm:$0xff]
        %v396 = vld [vmem:[#allocation5 + $0x88] sm:$0xff]
        %v397 = vld [vmem:[#allocation5 + $0x90] sm:$0xff]
        %v398 = vld [vmem:[#allocation5 + $0x98] sm:$0xff]
        %v399 = vld [vmem:[#allocation5 + $0xa0] sm:$0xff]
        %v400 = vld [vmem:[#allocation5 + $0xa8] sm:$0xff]
        %v401 = vld [vmem:[#allocation5 + $0xb0] sm:$0xff]
        %v402 = vld [vmem:[#allocation5 + $0xb8] sm:$0xff]
        %v403 = vld [vmem:[#allocation5 + $0xc0] sm:$0xff]
        %v404 = vld [vmem:[#allocation5 + $0xc8] sm:$0xff]
        %v405 = vld [vmem:[#allocation5 + $0xd0] sm:$0xff]
        %v406 = vld [vmem:[#allocation5 + $0xd8] sm:$0xff]
        %v407 = vld [vmem:[#allocation5 + $0xe0] sm:$0xff]
        %v408 = vld [vmem:[#allocation5 + $0xe8] sm:$0xff]
        %v409 = vld [vmem:[#allocation5 + $0xf0] sm:$0xff]
        %v410 = vld [vmem:[#allocation5 + $0xf8] sm:$0xff]
        %v411 = vld [vmem:[#allocation5 + $0x100] sm:$0xff]
        %v412 = vld [vmem:[#allocation5 + $0x108] sm:$0xff]
        %v413 = vld [vmem:[#allocation5 + $0x110] sm:$0xff]
        %v414 = vld [vmem:[#allocation5 + $0x118] sm:$0xff]
        %v415 = vld [vmem:[#allocation5 + $0x120] sm:$0xff]
        %v416 = vld [vmem:[#allocation5 + $0x128] sm:$0xff]
        %v417 = vld [vmem:[#allocation5 + $0x130] sm:$0xff]
        %v418 = vld [vmem:[#allocation5 + $0x138] sm:$0xff]
        %v419 = vld [vmem:[#allocation5 + $0x140] sm:$0xff]
        %v420 = vld [vmem:[#allocation5 + $0x148] sm:$0xff]
        %v421 = vld [vmem:[#allocation5 + $0x150] sm:$0xff]
        %v422 = vld [vmem:[#allocation5 + $0x158] sm:$0xff]
        %v423 = vld [vmem:[#allocation5 + $0x160] sm:$0xff]
        %v424 = vld [vmem:[#allocation5 + $0x168] sm:$0xff]
        %v425 = vld [vmem:[#allocation5 + $0x170] sm:$0xff]
        %v426 = vld [vmem:[#allocation5 + $0x178] sm:$0xff]
        %v427 = vld [vmem:[#allocation5 + $0x180] sm:$0xff]
        %v428 = vld [vmem:[#allocation5 + $0x188] sm:$0xff]
        %v429 = vld [vmem:[#allocation5 + $0x190] sm:$0xff]
        %v430 = vld [vmem:[#allocation5 + $0x198] sm:$0xff]
        %v431 = vld [vmem:[#allocation5 + $0x1a0] sm:$0xff]
        %v432 = vld [vmem:[#allocation5 + $0x1a8] sm:$0xff]
        %v433 = vld [vmem:[#allocation5 + $0x1b0] sm:$0xff]
        %v434 = vld [vmem:[#allocation5 + $0x1b8] sm:$0xff]
        %v435 = vld [vmem:[#allocation5 + $0x1c0] sm:$0xff]
        %v436 = vld [vmem:[#allocation5 + $0x1c8] sm:$0xff]
        %v437 = vld [vmem:[#allocation5 + $0x1d0] sm:$0xff]
        %v438 = vld [vmem:[#allocation5 + $0x1d8] sm:$0xff]
        %v439 = vld [vmem:[#allocation5 + $0x1e0] sm:$0xff]
        %v440 = vld [vmem:[#allocation5 + $0x1e8] sm:$0xff]
        %v441 = vld [vmem:[#allocation5 + $0x1f0] sm:$0xff]
        %v442 = vld [vmem:[#allocation5 + $0x1f8] sm:$0xff]
        %v443 = vld [vmem:[%s2] sm:$0x3]
        %v445 = vlaneseq
        %v446 = vshrl.u32 %v445, 7
        %v447 = vsub.s32 0, %v446
        %v448 = vrot.slane %v443, %v447
        %v449 = vlaneseq
        %v450 = vshrl.u32 %v449, 7
        %v451 = vsub.s32 1, %v450
        %v452 = vrot.slane %v443, %v451
        %455 = vmatprep.subr.mxu0 %v410
        %456 = vmatpush1.msra.mxu0 %v409
        %457 = vmatprep.subr.mxu0 %v408
        %458 = vmatpush1.msra.mxu0 %v407
        %459 = vmatprep.subr.mxu0 %v406
        %460 = vmatpush1.msra.mxu0 %v405
        %461 = vmatprep.subr.mxu0 %v404
        %462 = vmatpush1.msra.mxu0 %v403
        %463 = vmatprep.subr.mxu0 %v402
        %464 = vmatpush1.msra.mxu0 %v401
        %465 = vmatprep.subr.mxu0 %v400
        %466 = vmatpush1.msra.mxu0 %v399
        %467 = vmatprep.subr.mxu0 %v398
        %468 = vmatpush1.msra.mxu0 %v397
        %469 = vmatprep.subr.mxu0 %v396
        %470 = vmatpush1.msra.mxu0 %v395
        %471 = vmatprep.subr.mxu0 %v394
        %472 = vmatpush1.msra.mxu0 %v393
        %473 = vmatprep.subr.mxu0 %v392
        %474 = vmatpush1.msra.mxu0 %v391
        %475 = vmatprep.subr.mxu0 %v390
        %476 = vmatpush1.msra.mxu0 %v389
        %477 = vmatprep.subr.mxu0 %v388
        %478 = vmatpush1.msra.mxu0 %v387
        %479 = vmatprep.subr.mxu0 %v386
        %480 = vmatpush1.msra.mxu0 %v385
        %481 = vmatprep.subr.mxu0 %v384
        %482 = vmatpush1.msra.mxu0 %v383
        %483 = vmatprep.subr.mxu0 %v382
        %484 = vmatpush1.msra.mxu0 %v381
        %485 = vmatprep.subr.mxu0 %v380
        %486 = vmatpush1.msra.mxu0 %v379
        %487 = vmatprep.subr.mxu0 %v442
        %488 = vmatpush2.msra.mxu0 %v441
        %489 = vmatprep.subr.mxu0 %v440
        %490 = vmatpush2.msra.mxu0 %v439
        %491 = vmatprep.subr.mxu0 %v438
        %492 = vmatpush2.msra.mxu0 %v437
        %493 = vmatprep.subr.mxu0 %v436
        %494 = vmatpush2.msra.mxu0 %v435
        %495 = vmatprep.subr.mxu0 %v434
        %496 = vmatpush2.msra.mxu0 %v433
        %497 = vmatprep.subr.mxu0 %v432
        %498 = vmatpush2.msra.mxu0 %v431
        %499 = vmatprep.subr.mxu0 %v430
        %500 = vmatpush2.msra.mxu0 %v429
        %501 = vmatprep.subr.mxu0 %v428
        %502 = vmatpush2.msra.mxu0 %v427
        %503 = vmatprep.subr.mxu0 %v426
        %504 = vmatpush2.msra.mxu0 %v425
        %505 = vmatprep.subr.mxu0 %v424
        %506 = vmatpush2.msra.mxu0 %v423
        %507 = vmatprep.subr.mxu0 %v422
        %508 = vmatpush2.msra.mxu0 %v421
        %509 = vmatprep.subr.mxu0 %v420
        %510 = vmatpush2.msra.mxu0 %v419
        %511 = vmatprep.subr.mxu0 %v418
        %512 = vmatpush2.msra.mxu0 %v417
        %513 = vmatprep.subr.mxu0 %v416
        %514 = vmatpush2.msra.mxu0 %v415
        %515 = vmatprep.subr.mxu0 %v414
        %516 = vmatpush2.msra.mxu0 %v413
        %517 = vmatprep.subr.mxu0 %v412
        %518 = vmatpush2.msra.mxu0 %v411
        %519 = vmatprep.mubr.f32.mxu0 %v378
        %520 = vmatmul.mubr.f32.gmra.mxu0 %v377
        %v521 = vpop.f32.mrf.mxu0
        %v522 = vadd.f32 %v448, %v521
        %v523 = vpop.f32.mrf.mxu0
        %v524 = vadd.f32 %v452, %v523
        %525 = vdwg.mxu0
        %v526 = vmul.f32 %v522, 0.2
        %v527 = vmul.f32 %v524, 0.2
        %v528 = vmax.f32 %v522, %v526
        %v529 = vmax.f32 %v524, %v527
        %v530 = vld [vmem:[#allocation7] sm:$0xff]
        %v531 = vld [vmem:[#allocation7 + $0x8] sm:$0xff]
        %v532 = vld [vmem:[#allocation7 + $0x10] sm:$0xff]
        %v533 = vld [vmem:[#allocation7 + $0x18] sm:$0xff]
        %v534 = vld [vmem:[#allocation7 + $0x20] sm:$0xff]
        %v535 = vld [vmem:[#allocation7 + $0x28] sm:$0xff]
        %v536 = vld [vmem:[#allocation7 + $0x30] sm:$0xff]
        %v537 = vld [vmem:[#allocation7 + $0x38] sm:$0xff]
        %v538 = vld [vmem:[#allocation7 + $0x40] sm:$0xff]
        %v539 = vld [vmem:[#allocation7 + $0x48] sm:$0xff]
        %v540 = vld [vmem:[#allocation7 + $0x50] sm:$0xff]
        %v541 = vld [vmem:[#allocation7 + $0x58] sm:$0xff]
        %v542 = vld [vmem:[#allocation7 + $0x60] sm:$0xff]
        %v543 = vld [vmem:[#allocation7 + $0x68] sm:$0xff]
        %v544 = vld [vmem:[#allocation7 + $0x70] sm:$0xff]
        %v545 = vld [vmem:[#allocation7 + $0x78] sm:$0xff]
        %v546 = vld [vmem:[#allocation7 + $0x80] sm:$0xff]
        %v547 = vld [vmem:[#allocation7 + $0x88] sm:$0xff]
        %v548 = vld [vmem:[#allocation7 + $0x90] sm:$0xff]
        %v549 = vld [vmem:[#allocation7 + $0x98] sm:$0xff]
        %v550 = vld [vmem:[#allocation7 + $0xa0] sm:$0xff]
        %v551 = vld [vmem:[#allocation7 + $0xa8] sm:$0xff]
        %v552 = vld [vmem:[#allocation7 + $0xb0] sm:$0xff]
        %v553 = vld [vmem:[#allocation7 + $0xb8] sm:$0xff]
        %v554 = vld [vmem:[#allocation7 + $0xc0] sm:$0xff]
        %v555 = vld [vmem:[#allocation7 + $0xc8] sm:$0xff]
        %v556 = vld [vmem:[#allocation7 + $0xd0] sm:$0xff]
        %v557 = vld [vmem:[#allocation7 + $0xd8] sm:$0xff]
        %v558 = vld [vmem:[#allocation7 + $0xe0] sm:$0xff]
        %v559 = vld [vmem:[#allocation7 + $0xe8] sm:$0xff]
        %v560 = vld [vmem:[#allocation7 + $0xf0] sm:$0xff]
        %v561 = vld [vmem:[#allocation7 + $0xf8] sm:$0xff]
        %v562 = vld [vmem:[%s4] sm:$0x1]
        %v564 = vlaneseq
        %v565 = vshrl.u32 %v564, 7
        %v566 = vsub.s32 0, %v565
        %v567 = vrot.slane %v562, %v566
        %569 = vmatprep.subr.mxu0 0.0
        %570 = vmatpush1.msra.mxu0 %v545
        %571 = vmatprep.subr.mxu0 0.0
        %572 = vmatpush1.msra.mxu0 %v544
        %573 = vmatprep.subr.mxu0 0.0
        %574 = vmatpush1.msra.mxu0 %v543
        %575 = vmatprep.subr.mxu0 0.0
        %576 = vmatpush1.msra.mxu0 %v542
        %577 = vmatprep.subr.mxu0 0.0
        %578 = vmatpush1.msra.mxu0 %v541
        %579 = vmatprep.subr.mxu0 0.0
        %580 = vmatpush1.msra.mxu0 %v540
        %581 = vmatprep.subr.mxu0 0.0
        %582 = vmatpush1.msra.mxu0 %v539
        %583 = vmatprep.subr.mxu0 0.0
        %584 = vmatpush1.msra.mxu0 %v538
        %585 = vmatprep.subr.mxu0 0.0
        %586 = vmatpush1.msra.mxu0 %v537
        %587 = vmatprep.subr.mxu0 0.0
        %588 = vmatpush1.msra.mxu0 %v536
        %589 = vmatprep.subr.mxu0 0.0
        %590 = vmatpush1.msra.mxu0 %v535
        %591 = vmatprep.subr.mxu0 0.0
        %592 = vmatpush1.msra.mxu0 %v534
        %593 = vmatprep.subr.mxu0 0.0
        %594 = vmatpush1.msra.mxu0 %v533
        %595 = vmatprep.subr.mxu0 0.0
        %596 = vmatpush1.msra.mxu0 %v532
        %597 = vmatprep.subr.mxu0 0.0
        %598 = vmatpush1.msra.mxu0 %v531
        %599 = vmatprep.subr.mxu0 0.0
        %600 = vmatpush1.msra.mxu0 %v530
        %601 = vmatprep.subr.mxu0 0.0
        %602 = vmatpush2.msra.mxu0 %v561
        %603 = vmatprep.subr.mxu0 0.0
        %604 = vmatpush2.msra.mxu0 %v560
        %605 = vmatprep.subr.mxu0 0.0
        %606 = vmatpush2.msra.mxu0 %v559
        %607 = vmatprep.subr.mxu0 0.0
        %608 = vmatpush2.msra.mxu0 %v558
        %609 = vmatprep.subr.mxu0 0.0
        %610 = vmatpush2.msra.mxu0 %v557
        %611 = vmatprep.subr.mxu0 0.0
        %612 = vmatpush2.msra.mxu0 %v556
        %613 = vmatprep.subr.mxu0 0.0
        %614 = vmatpush2.msra.mxu0 %v555
        %615 = vmatprep.subr.mxu0 0.0
        %616 = vmatpush2.msra.mxu0 %v554
        %617 = vmatprep.subr.mxu0 0.0
        %618 = vmatpush2.msra.mxu0 %v553
        %619 = vmatprep.subr.mxu0 0.0
        %620 = vmatpush2.msra.mxu0 %v552
        %621 = vmatprep.subr.mxu0 0.0
        %622 = vmatpush2.msra.mxu0 %v551
        %623 = vmatprep.subr.mxu0 0.0
        %624 = vmatpush2.msra.mxu0 %v550
        %625 = vmatprep.subr.mxu0 0.0
        %626 = vmatpush2.msra.mxu0 %v549
        %627 = vmatprep.subr.mxu0 0.0
        %628 = vmatpush2.msra.mxu0 %v548
        %629 = vmatprep.subr.mxu0 0.0
        %630 = vmatpush2.msra.mxu0 %v547
        %631 = vmatprep.subr.mxu0 0.0
        %632 = vmatpush2.msra.mxu0 %v546
        %633 = vmatprep.mubr.f32.mxu0 %v529
        %634 = vmatmul.mubr.f32.gmra.mxu0 %v528
        %v635 = vpop.f32.mrf.mxu0
        %v636 = vadd.f32 %v567, %v635
        %v637 = vpop.f32.mrf.mxu0
        %638 = vdwg.mxu0
        %v639 = vmul.f32 %v636, 0.2
        %v640 = vmax.f32 %v636, %v639
        %641 = vst [vmem:[%s376] sm:$0xff] %v640
        %v642 = vld [vmem:[#allocation8] sm:$0xff]
        %v643 = vld [vmem:[#allocation8 + $0x8] sm:$0xff]
        %v644 = vld [vmem:[#allocation8 + $0x10] sm:$0xff]
        %v645 = vld [vmem:[#allocation8 + $0x18] sm:$0xff]
        %v646 = vld [vmem:[#allocation8 + $0x20] sm:$0xff]
        %v647 = vld [vmem:[#allocation8 + $0x28] sm:$0xff]
        %v648 = vld [vmem:[#allocation8 + $0x30] sm:$0xff]
        %v649 = vld [vmem:[#allocation8 + $0x38] sm:$0xff]
        %v650 = vld [vmem:[#allocation8 + $0x40] sm:$0xff]
        %v651 = vld [vmem:[#allocation8 + $0x48] sm:$0xff]
        %v652 = vld [vmem:[#allocation8 + $0x50] sm:$0xff]
        %v653 = vld [vmem:[#allocation8 + $0x58] sm:$0xff]
        %v654 = vld [vmem:[#allocation8 + $0x60] sm:$0xff]
        %v655 = vld [vmem:[#allocation8 + $0x68] sm:$0xff]
        %v656 = vld [vmem:[#allocation8 + $0x70] sm:$0xff]
        %v657 = vld [vmem:[#allocation8 + $0x78] sm:$0xff]
        %v658 = vld [vmem:[%s6] sm:$0x1]
        %v660 = vlaneseq
        %v661 = vshrl.u32 %v660, 7
        %v662 = vsub.s32 0, %v661
        %v663 = vrot.slane %v658, %v662
        %665 = vmatprep.subr.mxu0 0.0
        %666 = vmatpush1.msra.mxu0 %v657
        %667 = vmatprep.subr.mxu0 0.0
        %668 = vmatpush1.msra.mxu0 %v656
        %669 = vmatprep.subr.mxu0 0.0
        %670 = vmatpush1.msra.mxu0 %v655
        %671 = vmatprep.subr.mxu0 0.0
        %672 = vmatpush1.msra.mxu0 %v654
        %673 = vmatprep.subr.mxu0 0.0
        %674 = vmatpush1.msra.mxu0 %v653
        %675 = vmatprep.subr.mxu0 0.0
        %676 = vmatpush1.msra.mxu0 %v652
        %677 = vmatprep.subr.mxu0 0.0
        %678 = vmatpush1.msra.mxu0 %v651
        %679 = vmatprep.subr.mxu0 0.0
        %680 = vmatpush1.msra.mxu0 %v650
        %681 = vmatprep.subr.mxu0 0.0
        %682 = vmatpush1.msra.mxu0 %v649
        %683 = vmatprep.subr.mxu0 0.0
        %684 = vmatpush1.msra.mxu0 %v648
        %685 = vmatprep.subr.mxu0 0.0
        %686 = vmatpush1.msra.mxu0 %v647
        %687 = vmatprep.subr.mxu0 0.0
        %688 = vmatpush1.msra.mxu0 %v646
        %689 = vmatprep.subr.mxu0 0.0
        %690 = vmatpush1.msra.mxu0 %v645
        %691 = vmatprep.subr.mxu0 0.0
        %692 = vmatpush1.msra.mxu0 %v644
        %693 = vmatprep.subr.mxu0 0.0
        %694 = vmatpush1.msra.mxu0 %v643
        %695 = vmatprep.subr.mxu0 0.0
        %696 = vmatpush1.msra.mxu0 %v642
        %697 = vmatprep.subr.mxu0 0.0
        %698 = vmatpush2.msra.mxu0 0.0
        %699 = vmatprep.subr.mxu0 0.0
        %700 = vmatpush2.msra.mxu0 0.0
        %701 = vmatprep.subr.mxu0 0.0
        %702 = vmatpush2.msra.mxu0 0.0
        %703 = vmatprep.subr.mxu0 0.0
        %704 = vmatpush2.msra.mxu0 0.0
        %705 = vmatprep.subr.mxu0 0.0
        %706 = vmatpush2.msra.mxu0 0.0
        %707 = vmatprep.subr.mxu0 0.0
        %708 = vmatpush2.msra.mxu0 0.0
        %709 = vmatprep.subr.mxu0 0.0
        %710 = vmatpush2.msra.mxu0 0.0
        %711 = vmatprep.subr.mxu0 0.0
        %712 = vmatpush2.msra.mxu0 0.0
        %713 = vmatprep.subr.mxu0 0.0
        %714 = vmatpush2.msra.mxu0 0.0
        %715 = vmatprep.subr.mxu0 0.0
        %716 = vmatpush2.msra.mxu0 0.0
        %717 = vmatprep.subr.mxu0 0.0
        %718 = vmatpush2.msra.mxu0 0.0
        %719 = vmatprep.subr.mxu0 0.0
        %720 = vmatpush2.msra.mxu0 0.0
        %721 = vmatprep.subr.mxu0 0.0
        %722 = vmatpush2.msra.mxu0 0.0
        %723 = vmatprep.subr.mxu0 0.0
        %724 = vmatpush2.msra.mxu0 0.0
        %725 = vmatprep.subr.mxu0 0.0
        %726 = vmatpush2.msra.mxu0 0.0
        %727 = vmatprep.subr.mxu0 0.0
        %728 = vmatpush2.msra.mxu0 0.0
        %729 = vmatprep.mubr.f32.mxu0 0.0
        %730 = vmatmul.mubr.f32.gmra.mxu0 %v640
        %v731 = vpop.f32.mrf.mxu0
        %v732 = vadd.f32 %v663, %v731
        %v733 = vpop.f32.mrf.mxu0
        %734 = vdwg.mxu0
        %v735 = vxor.u32 %v732, 2147483648
        %v736 = vmul.f32 %v735, 1.442695
        %v737 = vpow.pop %v736
        %v738 = vadd.f32 %v737, 1.0
        %v739 = vrcp.pop %v738
        %v740 = vmul.f32 1.0, %v739
        %741 = vst [vmem:[%s369] sm:$0xff] %v740
        %s742 = sand.u32 %s191, 1
        %s743 = scalar_lea.sflag [#allocation4], %s742
        %s744 = sand.u32 %s191, 1
        %s745 = smul.addr %s744, 8
        %s746 = scalar_lea.vmem [#allocation10], %s745
        %s747 = sand.u32 %s217, 1
        %s748 = scalar_lea.sflag [#allocation12], %s747
        %s749 = sand.u32 %s217, 1
        %s750 = smul.addr %s749, 8
        %s751 = scalar_lea.vmem [#allocation11], %s750
        // Predicated region
        $region65: #{tpu_custom_call.1} parent=47 // pred_check
          %p752 = pneg %p201
        $region66: #{tpu_custom_call.1} parent=47 // pred_check_branch
          %754 = sbr.rel (%p752) target = $region68
        $region67: #{tpu_custom_call.1} parent=47 // pred_region
          %s756 = ssub.s32 128, 128
          %757 = vsyncadd %s743, %s756
          %s758 = smul.addr %s31, 128
          %s759 = scalar_lea.hbm %s7, %s758
          %s761 = sshll.u32 %s746, 4
          %s762 = int_to_ptr.vmem [resolvable:$true] %s761
          %764 = dma.vmem_to_hbm [thread:$0]  %s762, 128, %s759, %s743
        $region68: #{tpu_custom_call.1} parent=47 // pred_fallthru
          _
        // Predicated region
        $region69: #{tpu_custom_call.1} parent=47 // pred_check
          %p765 = pneg %p227
        $region70: #{tpu_custom_call.1} parent=47 // pred_check_branch
          %767 = sbr.rel (%p765) target = $region72
        $region71: #{tpu_custom_call.1} parent=47 // pred_region
          %s769 = ssub.s32 128, 128
          %770 = vsyncadd %s748, %s769
          %s771 = smul.addr %s31, 128
          %s772 = scalar_lea.hbm %s8, %s771
          %s774 = sshll.u32 %s751, 4
          %s775 = int_to_ptr.vmem [resolvable:$true] %s774
          %777 = dma.vmem_to_hbm [thread:$0]  %s775, 128, %s772, %s748
        $region72: #{tpu_custom_call.1} parent=47 // pred_fallthru
          _
      $region48: #{tpu_custom_call.1} parent=5 // pred_fallthru
        _
      %p778 = scmp.le.s32.totalorder 2, %s26
      // Predicated region
      $region73: #{tpu_custom_call.1} parent=5 // pred_check
        %p779 = pneg %p778
      $region74: #{tpu_custom_call.1} parent=5 // pred_check_branch
        %781 = sbr.rel (%p779) target = $region76
      $region75: #{tpu_custom_call.1} parent=5 // pred_region
        %s782 = ssub.s32 %s26, 2
        // Predicated region
        $region77: #{tpu_custom_call.1} parent=75 // pred_check
          %p783 = pneg %p207
        $region78: #{tpu_custom_call.1} parent=75 // pred_check_branch
          %785 = sbr.rel (%p783) target = $region80
        $region79: #{tpu_custom_call.1} parent=75 // pred_region
          %s786 = sand.u32 %s192, 1
          %s787 = scalar_lea.sflag [#allocation4], %s786
          %s788 = sand.u32 %s192, 1
          %s789 = smul.addr %s788, 8
          %s790 = scalar_lea.vmem [#allocation10], %s789
          %791 = dma.done %s787, 128
        $region80: #{tpu_custom_call.1} parent=75 // pred_fallthru
          _
        // Predicated region
        $region81: #{tpu_custom_call.1} parent=75 // pred_check
          %p792 = pneg %p233
        $region82: #{tpu_custom_call.1} parent=75 // pred_check_branch
          %794 = sbr.rel (%p792) target = $region84
        $region83: #{tpu_custom_call.1} parent=75 // pred_region
          %s795 = sand.u32 %s218, 1
          %s796 = scalar_lea.sflag [#allocation12], %s795
          %s797 = sand.u32 %s218, 1
          %s798 = smul.addr %s797, 8
          %s799 = scalar_lea.vmem [#allocation11], %s798
          %800 = dma.done %s796, 128
        $region84: #{tpu_custom_call.1} parent=75 // pred_fallthru
          _
      $region76: #{tpu_custom_call.1} parent=5 // pred_fallthru
        _
    $region6: #{tpu_custom_call.1} parent=1 // loop_footer
      %s30 = sadd.s32 1, %s26
    $region7: #{tpu_custom_call.1} parent=1 // loop_footer_branch
      %25 = sbr.rel target = $region3
    $region8: #{tpu_custom_call.1} parent=1 // loop_exit
      _
    %801 = vsyncpa [#allocation3], 1
    %s802 = scalar_lea.sflag [#allocation3], 1
    %803 = vsyncpa %s802, 1
    %804 = vsyncpa [#allocation6], 1
    %805 = vsyncpa [#allocation9], 1
    %806 = vsyncpa [#allocation4], 1
    %s807 = scalar_lea.sflag [#allocation4], 1
    %808 = vsyncpa %s807, 1
    %809 = vsyncpa [#allocation12], 1
    %s810 = scalar_lea.sflag [#allocation12], 1
    %811 = vsyncpa %s810, 1

</llo_original>
